<compile_context>
chip_gen: v7x
topology: tpu7x:2x2x1
jax: 0.10.0
libtpu: 0.0.40
codegen_flags: <defaults>
</compile_context>

<pallas_src>
import functools
import numpy as np
import jax
import jax.numpy as jnp
from jax.experimental import pallas as pl
from jax.experimental.pallas import tpu as pltpu

LOG_2PI = float(np.log(2.0 * np.pi))


def _round_up(a, m):
    return (a + m - 1) // m * m


def _lgamma_stirling4(z):
    """lgamma(z) for z >= 1 via a shift-by-4 Stirling expansion.

    One 4-term product (cannot overflow f32 for any realistic count, z <~ 1e8),
    two EUP logs, and a 2-term series on an approx reciprocal.  Exact-arithmetic
    error <~ 3e-7 per element; approx-recip adds a few e-6, which stays well
    inside the summed-overlap tolerance.
    """
    p = z * (z + 1.0) * (z + 2.0) * (z + 3.0)
    w = z + 4.0
    inv_w = pl.reciprocal(w, approx=True)
    inv_w2 = inv_w * inv_w
    series = inv_w * (1.0 / 12.0) - (inv_w * inv_w2) * (1.0 / 360.0)
    return (w - 0.5) * jnp.log(w) - w + 0.5 * LOG_2PI + series - jnp.log(p)


def stage1_kernel(x_ref, logchi_ref, w0g_ref, stats_ref, gmat_ref, *,
                  n_rows, n_cols, tile_b, tile_g, mask_rows, mask_cols):
    """Per (batch_tile, gene_tile) step: accumulate row statistics + partial matmul."""
    j = pl.program_id(1)

    @pl.when(j == 0)
    def _():
        stats_ref[...] = jnp.zeros_like(stats_ref)
        gmat_ref[...] = jnp.zeros_like(gmat_ref)

    x = x_ref[...].astype(jnp.float32)                # (TB, TG) counts, any input dtype

    # Mask ragged edge tiles (only generated when the dim really is ragged).
    if mask_rows or mask_cols:
        valid = None
        if mask_cols:
            col = jax.lax.broadcasted_iota(jnp.int32, x.shape, 1) + j * tile_g
            valid = col < n_cols
        if mask_rows:
            row = (jax.lax.broadcasted_iota(jnp.int32, x.shape, 0)
                   + pl.program_id(0) * tile_b)
            rvalid = row < n_rows
            valid = rvalid if valid is None else jnp.logical_and(valid, rvalid)
        x = jnp.where(valid, x, 0.0)

    logchi = logchi_ref[...]                          # (1, TG) precomputed log(chi)

    z = x + 1.0
    x_t = jnp.log(z)                                  # == log1p(x), 'log' transform

    counts_p = jnp.sum(x, axis=-1, keepdims=True)                          # (TB, 1)
    nnz_p = jnp.sum(jnp.where(x > 0.0, 1.0, 0.0), axis=-1, keepdims=True)
    xlogchi_p = jnp.sum(x * logchi, axis=-1, keepdims=True)
    lg_p = jnp.sum(_lgamma_stirling4(z), axis=-1, keepdims=True)
    sxt_p = jnp.sum(x_t, axis=-1, keepdims=True)
    sxt2_p = jnp.sum(x_t * x_t, axis=-1, keepdims=True)

    # Gene-side partial matmul; x_scaling is a global scalar and is applied in
    # stage 2 (scaled_matmul = x_scaling * (x_t @ W0g)).  W0g is already bf16.
    gmat_ref[...] += jnp.dot(x_t.astype(jnp.bfloat16), w0g_ref[...],
                             preferred_element_type=jnp.float32)

    # Pack the six per-row partial sums into one lane-packed (TB, 8) slab.
    lane = jax.lax.broadcasted_iota(jnp.int32, stats_ref.shape, 1)
    stats = (jnp.where(lane == 0, counts_p, 0.0)
             + jnp.where(lane == 1, nnz_p, 0.0)
             + jnp.where(lane == 2, xlogchi_p, 0.0)
             + jnp.where(lane == 3, lg_p, 0.0)
             + jnp.where(lane == 4, sxt_p, 0.0)
             + jnp.where(lane == 5, sxt2_p, 0.0))
    stats_ref[...] += stats


def _masked_lower_median(vals, mask):
    # torch.median semantics: lower of the two middle values of the masked subset.
    n = jnp.sum(mask.astype(jnp.int32))
    order = jnp.sort(jnp.where(mask, vals, jnp.inf))
    idx = jnp.maximum((n - 1) // 2, 0)
    return order[idx]


def _masked_mean(vals, mask):
    n = jnp.maximum(jnp.sum(mask.astype(jnp.float32)), 1.0)
    return jnp.sum(jnp.where(mask, vals, 0.0)) / n


def encode_nonz_forward(x, chi_ambient, z, params, *, log_count_crossover,
                        P_OUTPUT_SCALE=1.0, EPS_OUTPUT_SCALE=0.05,
                        EPS_OUTPUT_MEAN=1.0, tile_b=256, tile_g=4096,
                        return_aux=False):
    """Equivalent of EncodeNonZLatents.forward (first call, 'log' transform).

    `z` is accepted for signature fidelity but (as in the PyTorch forward) unused.
    """
    del z
    B, G = x.shape
    w0f, w0g, b0, w1, b1, wo, bo = params
    H0 = w0g.shape[1]
    H0p = _round_up(H0, 128)                   # lane-dense gmat block, full MXU width

    tile_b = _round_up(min(tile_b, _round_up(B, 8)), 8)
    tile_g = _round_up(min(tile_g, _round_up(G, 128)), 128)
    grid_b = pl.cdiv(B, tile_b)
    grid_g = pl.cdiv(G, tile_g)
    Gp = grid_g * tile_g
    mask_rows = (B % tile_b) != 0
    mask_cols = (G % tile_g) != 0

    chi32 = chi_ambient.astype(jnp.float32).reshape(1, G)
    log_chi = jnp.log(chi32)                   # precomputed once; removes a (B,G) EUP log
    chi_total = jnp.sum(chi32)

    # Only the small per-gene arrays are padded (to a whole number of gene tiles);
    # x itself is streamed unpadded (no extra full HBM read+write pass) and the
    # ragged edge is masked in-kernel.
    logchi_pad = jnp.pad(log_chi, ((0, 0), (0, Gp - G)))
    w0g_pad = jnp.pad(w0g.astype(jnp.bfloat16), ((0, Gp - G), (0, H0p - H0)))

    kernel = functools.partial(stage1_kernel, n_rows=B, n_cols=G,
                               tile_b=tile_b, tile_g=tile_g,
                               mask_rows=mask_rows, mask_cols=mask_cols)

    stats, gmat = pl.pallas_call(
        kernel,
        grid=(grid_b, grid_g),
        in_specs=[
            pl.BlockSpec((tile_b, tile_g), lambda i, j: (i, j)),
            pl.BlockSpec((1, tile_g), lambda i, j: (0, j)),
            pl.BlockSpec((tile_g, H0p), lambda i, j: (j, 0)),
        ],
        out_specs=(
            pl.BlockSpec((tile_b, 8), lambda i, j: (i, 0)),
            pl.BlockSpec((tile_b, H0p), lambda i, j: (i, 0)),
        ),
        out_shape=(jax.ShapeDtypeStruct((B, 8), jnp.float32),
                   jax.ShapeDtypeStruct((B, H0p), jnp.float32)),
        compiler_params=pltpu.CompilerParams(
            dimension_semantics=("parallel", "arbitrary"),
            vmem_limit_bytes=48 * 1024 * 1024),
    )(x, logchi_pad, w0g_pad)

    # ---------------- stage 2: tiny per-row finalization (plain XLA) ----------------
    gmat = gmat[:, :H0]
    counts = stats[:, 0:1]
    nnz = stats[:, 1:2]
    xlogchi = stats[:, 2:3]
    lg_sum = stats[:, 3:4]
    sxt = stats[:, 4:5]
    sxt2 = stats[:, 5:6]

    log_sum = jnp.log1p(counts)
    log_nnz = jnp.log1p(nnz)

    # overlap = sum_g [log(counts*chi_g)*x_g - counts*chi_g - lgamma(x_g+1)]
    #         = counts*log(counts) + sum_g x_g*log(chi_g) - counts*sum(chi) - sum_g lgamma
    safe_logc = jnp.where(counts > 0.0, jnp.log(jnp.maximum(counts, 1e-30)), 0.0)
    overlap = counts * safe_logc + xlogchi - counts * chi_total - lg_sum

    o_max = jnp.max(overlap)
    o_min = jnp.min(overlap)
    denom = jnp.where(o_max > o_min, o_max - o_min, 1.0)
    overlap_n = (overlap - 0.5 * (o_max + o_min)) / denom * 5.0

    # one-pass variance of log1p(x) over all (real) elements
    n_elem = float(B * G)
    tot = jnp.sum(sxt)
    tot2 = jnp.sum(sxt2)
    var = jnp.maximum((tot2 - tot * tot / n_elem) / (n_elem - 1.0), 1e-12)
    # TODO(synk): original uses the median of torch.std over 10 random 40% subsets
    # (torch.randperm); approximated deterministically by the global std of log1p(x).
    x_scaling = jax.lax.rsqrt(var) / 100.0

    # MLP on x_in = [log_sum, log_nnz, overlap, x_t * x_scaling]
    h = (log_sum * w0f[0:1, :]
         + log_nnz * w0f[1:2, :]
         + overlap_n * w0f[2:3, :]
         + x_scaling * gmat
         + b0)
    h = jax.nn.softplus(h)
    h = jax.nn.softplus(h @ w1 + b1)
    out = h @ wo + bo                                             # (B, 3)

    # ---- first-call offset initialization (device-side, no host sync) ----
    log_sum_v = log_sum[:, 0]
    cells = log_sum_v > log_count_crossover
    not_cells = jnp.logical_not(cells)
    n_cells = jnp.sum(cells.astype(jnp.int32))
    n_empty = jnp.sum(not_cells.astype(jnp.int32))
    has_cells = n_cells > 0
    cell_med = _masked_lower_median(out[:, 0], cells)
    empty_med = _masked_lower_median(out[:, 0], not_cells)
    off_logit_p = jnp.where(jnp.logical_and(has_cells, n_empty > 0),
                            empty_med + (cell_med - empty_med) * (9.0 / 10.0), 0.0)
    # guard off_d / off_eps when no row crosses the count threshold (torch would NaN)
    off_d = jnp.where(has_cells, _masked_lower_median(out[:, 1], cells), 0.0)
    off_eps = jnp.where(has_cells, _masked_mean(out[:, 2], cells), 0.0)

    # ---- output heads ----
    p_y = (out[:, 0] - off_logit_p) * P_OUTPUT_SCALE
    epsilon = jax.nn.softplus((out[:, 2] - off_eps) * EPS_OUTPUT_SCALE + EPS_OUTPUT_MEAN)
    d_loc = jax.nn.softplus(out[:, 1] - off_d
                            + jax.nn.softplus(log_sum_v - log_count_crossover)
                            + log_count_crossover)
    result = {'p_y': p_y, 'd_loc': d_loc, 'epsilon': epsilon}
    if return_aux:
        aux = {'counts': counts[:, 0], 'nnz': nnz[:, 0],
               'overlap': overlap[:, 0], 'out': out}
        return result, aux
    return result


def init_params(key, n_genes, hidden_dims):
    """Deterministic nn.Linear-style init + the module's _weight_init tweaks.

    NOTE: this implementation assumes exactly two hidden layers.
    """
    assert len(hidden_dims) == 2
    dims = [3 + n_genes] + list(hidden_dims)
    keys = jax.random.split(key, 2 * len(hidden_dims) + 2)
    Ws, bs = [], []
    ki = 0
    for i in range(len(hidden_dims)):
        bound = 1.0 / np.sqrt(dims[i])
        W = jax.random.uniform(keys[ki], (dims[i], dims[i + 1]), jnp.float32,
                               -bound, bound); ki += 1
        b = jax.random.uniform(keys[ki], (1, dims[i + 1]), jnp.float32,
                               -bound, bound); ki += 1
        W = W.at[0, 0].set(1.0)                     # linear.weight[0][0] = 1.0
        Ws.append(W); bs.append(b)
    bound = 1.0 / np.sqrt(hidden_dims[-1])
    Wo = jax.random.uniform(keys[ki], (hidden_dims[-1], 3), jnp.float32,
                            -bound, bound); ki += 1
    bo = jax.random.uniform(keys[ki], (1, 3), jnp.float32, -bound, bound)
    Wo = Wo.at[0, 0].set(2.0)                       # INITIAL_WEIGHT_FOR_LOG_COUNTS
    Wo = Wo.at[0, 1].set(jnp.abs(Wo[0, 1]))
    Wo = Wo.at[0, 2].set(jnp.abs(Wo[0, 2]))
    return Ws, bs, Wo, bo


if __name__ == "__main__":
    key = jax.random.PRNGKey(0)
    B, G, Z_DIM = 16, 384, 16
    hidden_dims = [64, 32]
    log_count_crossover = 5.5      # between "empty" and "cell" rows below

    k1, k2, k3, k4 = jax.random.split(key, 4)

    # half the rows are "empty droplets" (low counts), half are "cells"
    lam = jnp.concatenate([jnp.full((B // 2, 1), 0.3),
                           jnp.full((B - B // 2, 1), 8.0)], axis=0)
    x = jax.random.poisson(k1, lam, shape=(B, G)).astype(jnp.float32)
    chi_ambient = jax.nn.softmax(jax.random.normal(k2, (1, G)),
                                 axis=-1).astype(jnp.float32)
    z = jax.random.normal(k4, (B, Z_DIM), dtype=jnp.float32)   # unused by forward

    Ws, bs, Wo, bo = init_params(k3, G, hidden_dims)
    params = (Ws[0][:3], Ws[0][3:], bs[0], Ws[1], bs[1], Wo, bo)

    # pure-JAX references for the reductions
    counts_ref = jnp.sum(x, axis=-1)
    nnz_ref = jnp.sum((x > 0).astype(jnp.float32), axis=-1)
    lam_full = counts_ref[:, None] * chi_ambient
    overlap_ref = jnp.sum(jnp.log(lam_full) * x - lam_full
                          - jax.lax.lgamma(x + 1.0), axis=-1)

    # 1) evenly-tiled path (no in-kernel masking)
    fwd = jax.jit(functools.partial(
        encode_nonz_forward, log_count_crossover=log_count_crossover,
        tile_b=8, tile_g=128, return_aux=True))
    result, aux = fwd(x, chi_ambient, z, params)
    jax.block_until_ready(result)

    assert result['p_y'].shape == (B,)
    assert result['d_loc'].shape == (B,)
    assert result['epsilon'].shape == (B,)
    assert all(bool(jnp.all(jnp.isfinite(v))) for v in result.values())
    assert bool(jnp.allclose(aux['counts'], counts_ref, rtol=1e-6, atol=1e-3))
    assert bool(jnp.allclose(aux['nnz'], nnz_ref, rtol=1e-6, atol=1e-3))
    assert bool(jnp.allclose(aux['overlap'], overlap_ref, rtol=2e-3, atol=0.5))

    # 2) ragged batch (12 % 8 != 0) and ragged gene (384 % 256 != 0) tiles:
    #    exercises the in-kernel masking path (no wrapper-side pad of x).
    fwd_r = jax.jit(functools.partial(
        encode_nonz_forward, log_count_crossover=log_count_crossover,
        tile_b=8, tile_g=256, return_aux=True))
    result_r, aux_r = fwd_r(x[:12], chi_ambient, z[:12], params)
    jax.block_until_ready(result_r)

    assert result_r['p_y'].shape == (12,)
    assert all(bool(jnp.all(jnp.isfinite(v))) for v in result_r.values())
    assert bool(jnp.allclose(aux_r['counts'], counts_ref[:12], rtol=1e-6, atol=1e-3))
    assert bool(jnp.allclose(aux_r['nnz'], nnz_ref[:12], rtol=1e-6, atol=1e-3))
    assert bool(jnp.allclose(aux_r['overlap'], overlap_ref[:12], rtol=2e-3, atol=0.5))

    print("KERNEL_OK")
</pallas_src>

<mosaic_0001>
module attributes {stable_mosaic.version = 11 : i64} {
  func.func @stage1_kernel(%arg0: i32, %arg1: i32, %arg2: memref<8x128xf32, #tpu.memory_space<vmem>>, %arg3: memref<1x128xf32, #tpu.memory_space<vmem>>, %arg4: memref<128x128xbf16, #tpu.memory_space<vmem>>, %arg5: memref<8x8xf32, #tpu.memory_space<vmem>>, %arg6: memref<8x128xf32, #tpu.memory_space<vmem>>) attributes {dimension_semantics = [#tpu.dimension_semantics<parallel>, #tpu.dimension_semantics<arbitrary>], iteration_bounds = array<i64: 2, 3>, scalar_prefetch = 0 : i64, scratch_operands = 0 : i64, tpu.core_type = #tpu.core_type<tc>, window_params = [{transform_indices = @transform_0, window_bounds = array<i64: 8, 128>}, {transform_indices = @transform_1, window_bounds = array<i64: 1, 128>}, {transform_indices = @transform_2, window_bounds = array<i64: 128, 128>}, {transform_indices = @transform_3, window_bounds = array<i64: 8, 8>}, {transform_indices = @transform_4, window_bounds = array<i64: 8, 128>}]} {
    %c0_i32 = arith.constant 0 : i32
    %0 = arith.cmpi eq, %arg1, %c0_i32 : i32
    %1 = arith.extui %0 : i1 to i32
    %c0_i32_0 = arith.constant 0 : i32
    %2 = arith.cmpi ne, %1, %c0_i32_0 : i32
    scf.if %2 {
      %cst_39 = arith.constant 0.000000e+00 : f32
      %108 = vector.broadcast %cst_39 : f32 to vector<8x8xf32>
      %c0_40 = arith.constant 0 : index
      %c0_41 = arith.constant 0 : index
      %109 = vector.load %arg5[%c0_40, %c0_41] : memref<8x8xf32, #tpu.memory_space<vmem>>, vector<8x8xf32>
      tpu.vector_store %arg5[%c0_40, %c0_41], %108 {strides = array<i32>} : memref<8x8xf32, #tpu.memory_space<vmem>>, vector<8x8xf32>,
      %cst_42 = arith.constant 0.000000e+00 : f32
      %110 = vector.broadcast %cst_42 : f32 to vector<8x128xf32>
      %c0_43 = arith.constant 0 : index
      %c0_44 = arith.constant 0 : index
      %111 = vector.load %arg6[%c0_43, %c0_44] : memref<8x128xf32, #tpu.memory_space<vmem>>, vector<8x128xf32>
      tpu.vector_store %arg6[%c0_43, %c0_44], %110 {strides = array<i32>} : memref<8x128xf32, #tpu.memory_space<vmem>>, vector<8x128xf32>,
    } else {
    }
    %c0 = arith.constant 0 : index
    %c0_1 = arith.constant 0 : index
    %3 = vector.load %arg2[%c0, %c0_1] : memref<8x128xf32, #tpu.memory_space<vmem>>, vector<8x128xf32>
    %c0_2 = arith.constant 0 : index
    %c0_3 = arith.constant 0 : index
    %4 = vector.load %arg3[%c0_2, %c0_3] : memref<1x128xf32, #tpu.memory_space<vmem>>, vector<1x128xf32>
    %cst = arith.constant 1.000000e+00 : f32
    %5 = vector.broadcast %cst : f32 to vector<8x128xf32>
    %6 = arith.addf %3, %5 : vector<8x128xf32>
    %7 = math.log %6 : vector<8x128xf32>
    %cst_4 = arith.constant dense<0.000000e+00> : vector<8xf32>
    %8 = vector.multi_reduction <add>, %3, %cst_4 [1] : vector<8x128xf32> to vector<8xf32>
    %9 = vector.shape_cast %8 : vector<8xf32> to vector<8x1xf32>
    %cst_5 = arith.constant 0.000000e+00 : f32
    %10 = vector.broadcast %cst_5 : f32 to vector<8x128xf32>
    %11 = arith.cmpf ogt, %3, %10 : vector<8x128xf32>
    %cst_6 = arith.constant 1.000000e+00 : f32
    %cst_7 = arith.constant 0.000000e+00 : f32
    %12 = vector.broadcast %cst_6 : f32 to vector<8x128xf32>
    %13 = vector.broadcast %cst_7 : f32 to vector<8x128xf32>
    %14 = arith.select %11, %12, %13 : vector<8x128xi1>, vector<8x128xf32>
    %cst_8 = arith.constant dense<0.000000e+00> : vector<8xf32>
    %15 = vector.multi_reduction <add>, %14, %cst_8 [1] : vector<8x128xf32> to vector<8xf32>
    %16 = vector.shape_cast %15 : vector<8xf32> to vector<8x1xf32>
    %17 = vector.broadcast %4 : vector<1x128xf32> to vector<8x128xf32>
    %18 = arith.mulf %3, %17 : vector<8x128xf32>
    %cst_9 = arith.constant dense<0.000000e+00> : vector<8xf32>
    %19 = vector.multi_reduction <add>, %18, %cst_9 [1] : vector<8x128xf32> to vector<8xf32>
    %20 = vector.shape_cast %19 : vector<8xf32> to vector<8x1xf32>
    %cst_10 = arith.constant 1.000000e+00 : f32
    %21 = vector.broadcast %cst_10 : f32 to vector<8x128xf32>
    %22 = arith.addf %6, %21 : vector<8x128xf32>
    %23 = arith.mulf %6, %22 : vector<8x128xf32>
    %cst_11 = arith.constant 2.000000e+00 : f32
    %24 = vector.broadcast %cst_11 : f32 to vector<8x128xf32>
    %25 = arith.addf %6, %24 : vector<8x128xf32>
    %26 = arith.mulf %23, %25 : vector<8x128xf32>
    %cst_12 = arith.constant 3.000000e+00 : f32
    %27 = vector.broadcast %cst_12 : f32 to vector<8x128xf32>
    %28 = arith.addf %6, %27 : vector<8x128xf32>
    %29 = arith.mulf %26, %28 : vector<8x128xf32>
    %cst_13 = arith.constant 4.000000e+00 : f32
    %30 = vector.broadcast %cst_13 : f32 to vector<8x128xf32>
    %31 = arith.addf %6, %30 : vector<8x128xf32>
    %32 = tpu.reciprocal %31 {approx = true} : vector<8x128xf32> -> vector<8x128xf32>
    %33 = arith.mulf %32, %32 : vector<8x128xf32>
    %cst_14 = arith.constant 0.0833333358 : f32
    %34 = vector.broadcast %cst_14 : f32 to vector<8x128xf32>
    %35 = arith.mulf %32, %34 : vector<8x128xf32>
    %36 = arith.mulf %32, %33 : vector<8x128xf32>
    %cst_15 = arith.constant 0.00277777785 : f32
    %37 = vector.broadcast %cst_15 : f32 to vector<8x128xf32>
    %38 = arith.mulf %36, %37 : vector<8x128xf32>
    %39 = arith.subf %35, %38 : vector<8x128xf32>
    %cst_16 = arith.constant 5.000000e-01 : f32
    %40 = vector.broadcast %cst_16 : f32 to vector<8x128xf32>
    %41 = arith.subf %31, %40 : vector<8x128xf32>
    %42 = math.log %31 : vector<8x128xf32>
    %43 = arith.mulf %41, %42 : vector<8x128xf32>
    %44 = arith.subf %43, %31 : vector<8x128xf32>
    %cst_17 = arith.constant 0.918938517 : f32
    %45 = vector.broadcast %cst_17 : f32 to vector<8x128xf32>
    %46 = arith.addf %44, %45 : vector<8x128xf32>
    %47 = arith.addf %46, %39 : vector<8x128xf32>
    %48 = math.log %29 : vector<8x128xf32>
    %49 = arith.subf %47, %48 : vector<8x128xf32>
    %cst_18 = arith.constant dense<0.000000e+00> : vector<8xf32>
    %50 = vector.multi_reduction <add>, %49, %cst_18 [1] : vector<8x128xf32> to vector<8xf32>
    %51 = vector.shape_cast %50 : vector<8xf32> to vector<8x1xf32>
    %cst_19 = arith.constant dense<0.000000e+00> : vector<8xf32>
    %52 = vector.multi_reduction <add>, %7, %cst_19 [1] : vector<8x128xf32> to vector<8xf32>
    %53 = vector.shape_cast %52 : vector<8xf32> to vector<8x1xf32>
    %54 = arith.mulf %7, %7 : vector<8x128xf32>
    %cst_20 = arith.constant dense<0.000000e+00> : vector<8xf32>
    %55 = vector.multi_reduction <add>, %54, %cst_20 [1] : vector<8x128xf32> to vector<8xf32>
    %56 = vector.shape_cast %55 : vector<8xf32> to vector<8x1xf32>
    %c0_21 = arith.constant 0 : index
    %c0_22 = arith.constant 0 : index
    %57 = vector.load %arg6[%c0_21, %c0_22] : memref<8x128xf32, #tpu.memory_space<vmem>>, vector<8x128xf32>
    %58 = arith.truncf %7 : vector<8x128xf32> to vector<8x128xbf16>
    %c0_23 = arith.constant 0 : index
    %c0_24 = arith.constant 0 : index
    %59 = vector.load %arg4[%c0_23, %c0_24] : memref<128x128xbf16, #tpu.memory_space<vmem>>, vector<128x128xbf16>
    %cst_25 = arith.constant dense<0.000000e+00> : vector<8x128xf32>
    %60 = tpu.matmul %58, %59, %cst_25 {dimension_numbers = #tpu.dot_dimension_numbers<[1], [0], [0], [1], [0, 0, 1, 1], [], []>} : vector<8x128xbf16>, vector<128x128xbf16>, vector<8x128xf32> -> vector<8x128xf32>
    %61 = arith.addf %57, %60 : vector<8x128xf32>
    %c0_26 = arith.constant 0 : index
    %c0_27 = arith.constant 0 : index
    %62 = vector.load %arg6[%c0_26, %c0_27] : memref<8x128xf32, #tpu.memory_space<vmem>>, vector<8x128xf32>
    tpu.vector_store %arg6[%c0_26, %c0_27], %61 {strides = array<i32>} : memref<8x128xf32, #tpu.memory_space<vmem>>, vector<8x128xf32>,
    %63 = tpu.iota {dimensions = array<i32: 1>} : vector<8x8xi32>
    %c0_i32_28 = arith.constant 0 : i32
    %64 = vector.broadcast %c0_i32_28 : i32 to vector<8x8xi32>
    %65 = arith.cmpi eq, %63, %64 : vector<8x8xi32>
    %cst_29 = arith.constant 0.000000e+00 : f32
    %66 = vector.shape_cast %9 : vector<8x1xf32> to vector<8x1xf32>
    %67 = vector.broadcast %66 : vector<8x1xf32> to vector<8x8xf32>
    %68 = vector.broadcast %cst_29 : f32 to vector<8x8xf32>
    %69 = arith.select %65, %67, %68 : vector<8x8xi1>, vector<8x8xf32>
    %c1_i32 = arith.constant 1 : i32
    %70 = vector.broadcast %c1_i32 : i32 to vector<8x8xi32>
    %71 = arith.cmpi eq, %63, %70 : vector<8x8xi32>
    %cst_30 = arith.constant 0.000000e+00 : f32
    %72 = vector.shape_cast %16 : vector<8x1xf32> to vector<8x1xf32>
    %73 = vector.broadcast %72 : vector<8x1xf32> to vector<8x8xf32>
    %74 = vector.broadcast %cst_30 : f32 to vector<8x8xf32>
    %75 = arith.select %71, %73, %74 : vector<8x8xi1>, vector<8x8xf32>
    %76 = arith.addf %69, %75 : vector<8x8xf32>
    %c2_i32 = arith.constant 2 : i32
    %77 = vector.broadcast %c2_i32 : i32 to vector<8x8xi32>
    %78 = arith.cmpi eq, %63, %77 : vector<8x8xi32>
    %cst_31 = arith.constant 0.000000e+00 : f32
    %79 = vector.shape_cast %20 : vector<8x1xf32> to vector<8x1xf32>
    %80 = vector.broadcast %79 : vector<8x1xf32> to vector<8x8xf32>
    %81 = vector.broadcast %cst_31 : f32 to vector<8x8xf32>
    %82 = arith.select %78, %80, %81 : vector<8x8xi1>, vector<8x8xf32>
    %83 = arith.addf %76, %82 : vector<8x8xf32>
    %c3_i32 = arith.constant 3 : i32
    %84 = vector.broadcast %c3_i32 : i32 to vector<8x8xi32>
    %85 = arith.cmpi eq, %63, %84 : vector<8x8xi32>
    %cst_32 = arith.constant 0.000000e+00 : f32
    %86 = vector.shape_cast %51 : vector<8x1xf32> to vector<8x1xf32>
    %87 = vector.broadcast %86 : vector<8x1xf32> to vector<8x8xf32>
    %88 = vector.broadcast %cst_32 : f32 to vector<8x8xf32>
    %89 = arith.select %85, %87, %88 : vector<8x8xi1>, vector<8x8xf32>
    %90 = arith.addf %83, %89 : vector<8x8xf32>
    %c4_i32 = arith.constant 4 : i32
    %91 = vector.broadcast %c4_i32 : i32 to vector<8x8xi32>
    %92 = arith.cmpi eq, %63, %91 : vector<8x8xi32>
    %cst_33 = arith.constant 0.000000e+00 : f32
    %93 = vector.shape_cast %53 : vector<8x1xf32> to vector<8x1xf32>
    %94 = vector.broadcast %93 : vector<8x1xf32> to vector<8x8xf32>
    %95 = vector.broadcast %cst_33 : f32 to vector<8x8xf32>
    %96 = arith.select %92, %94, %95 : vector<8x8xi1>, vector<8x8xf32>
    %97 = arith.addf %90, %96 : vector<8x8xf32>
    %c5_i32 = arith.constant 5 : i32
    %98 = vector.broadcast %c5_i32 : i32 to vector<8x8xi32>
    %99 = arith.cmpi eq, %63, %98 : vector<8x8xi32>
    %cst_34 = arith.constant 0.000000e+00 : f32
    %100 = vector.shape_cast %56 : vector<8x1xf32> to vector<8x1xf32>
    %101 = vector.broadcast %100 : vector<8x1xf32> to vector<8x8xf32>
    %102 = vector.broadcast %cst_34 : f32 to vector<8x8xf32>
    %103 = arith.select %99, %101, %102 : vector<8x8xi1>, vector<8x8xf32>
    %104 = arith.addf %97, %103 : vector<8x8xf32>
    %c0_35 = arith.constant 0 : index
    %c0_36 = arith.constant 0 : index
    %105 = vector.load %arg5[%c0_35, %c0_36] : memref<8x8xf32, #tpu.memory_space<vmem>>, vector<8x8xf32>
    %106 = arith.addf %105, %104 : vector<8x8xf32>
    %c0_37 = arith.constant 0 : index
    %c0_38 = arith.constant 0 : index
    %107 = vector.load %arg5[%c0_37, %c0_38] : memref<8x8xf32, #tpu.memory_space<vmem>>, vector<8x8xf32>
    tpu.vector_store %arg5[%c0_37, %c0_38], %106 {strides = array<i32>} : memref<8x8xf32, #tpu.memory_space<vmem>>, vector<8x8xf32>,
    return
  }
  func.func @transform_0(%arg0: i32, %arg1: i32) -> (i32, i32) {
    %c0_i32 = arith.constant 0 : i32
    return %arg0, %arg1 : i32, i32
  }
  func.func @transform_1(%arg0: i32, %arg1: i32) -> (i32, i32) {
    %c0_i32 = arith.constant 0 : i32
    %c0_i32_0 = arith.constant 0 : i32
    return %c0_i32, %arg1 : i32, i32
  }
  func.func @transform_2(%arg0: i32, %arg1: i32) -> (i32, i32) {
    %c0_i32 = arith.constant 0 : i32
    %c0_i32_0 = arith.constant 0 : i32
    return %arg1, %c0_i32 : i32, i32
  }
  func.func @transform_3(%arg0: i32, %arg1: i32) -> (i32, i32) {
    %c0_i32 = arith.constant 0 : i32
    %c0_i32_0 = arith.constant 0 : i32
    return %arg0, %c0_i32 : i32, i32
  }
  func.func @transform_4(%arg0: i32, %arg1: i32) -> (i32, i32) {
    %c0_i32 = arith.constant 0 : i32
    %c0_i32_0 = arith.constant 0 : i32
    return %arg0, %c0_i32 : i32, i32
  }
}

</mosaic_0001>

<llo_original>
// kernel: encode_nonz_forward.1
$region0: #{encode_nonz_forward.1}
  #allocation0 [shape = 'u32[]', space=smem, size = 0x4, offset = 0x4, fixed_abs, tag = 'smem constant byte address 0x4 - core index']
  #allocation1 [shape = 'u32[144,128]{1,0:T(1,128)}', space=vmem, size = 0x12000, scoped, tag = 'internal scratch']
  %s0 = inlined_call_operand.vmem [shape: f32[16,384], index: 0, kind: input, shape index: {}]
  %s1 = inlined_call_operand.vmem [shape: f32[1,384], index: 1, kind: input, shape index: {}]
  %s2 = inlined_call_operand.vmem [shape: bf16[384,128], index: 2, kind: input, shape index: {}]
  %s3 = inlined_call_operand.vmem [shape: f32[16,8], index: 3, kind: output, shape index: {0}]
  %s4 = inlined_call_operand.vmem [shape: f32[16,128], index: 4, kind: output, shape index: {1}]
  %5 = xla_tuple %s3, %s4
  %s6 = sld [smem:[#allocation0]]
  $region57: #{encode_nonz_forward.1} parent=0
    _
  %s8 = ssub.s32 1, %s6
  %s9 = scalar_select 0, %s8, %s6
  loop: start=0, step=1, limit=8
  $region2: #{encode_nonz_forward.1} parent=0 // loop_pre_header
    _
  $region3: #{encode_nonz_forward.1} parent=0 // loop_header
    %s11 = sphi 0, %s15
    %p12 = scmp.ge.s32.totalorder %s11, 8
    %s18 = sphi 0, %s30
    %s19 = sphi 0, %s26
    %s20 = sphi 0, %s18
    %s21 = sphi 0, %s19
    %s22 = sphi 0, %s20
    %s23 = sphi 0, %s21
    %s35 = sphi 0, %s37
    %s38 = sphi 0, %s35
    %s39 = sphi 0, %s38
    %s55 = sphi 0, %s39
    %s61 = sphi 0, %s63
    %s64 = sphi 0, %s61
    %s65 = sphi 0, %s64
    %s81 = sphi 0, %s65
    %s87 = sphi 0, %s89
    %s90 = sphi 0, %s87
    %s91 = sphi 0, %s90
    %s107 = sphi 0, %s91
    %s113 = sphi 0, %s115
    %s116 = sphi 0, %s113
    %s117 = sphi 0, %s116
    %s133 = sphi 0, %s117
    %s139 = sphi 0, %s141
    %s142 = sphi 0, %s139
    %s143 = sphi 0, %s142
    %s159 = sphi 0, %s143
  $region4: #{encode_nonz_forward.1} parent=0 // loop_header_branch
    %14 = sbr.rel (%p12) target = $region8
  $region5: #{encode_nonz_forward.1} parent=0 // loop_body
    %s16 = ssub.s32 %s11, 1
    %s17 = ssub.s32 %s11, 2
    %s24 = sadd.s32 1, %s19
    %p25 = scmp.ge.s32.totalorder %s24, 3
    %s26 = scalar_select %p25, 0, %s24
    %s27 = sadd.s32 1, %s18
    %s28 = scalar_select %p25, %s27, %s18
    %p29 = scmp.ge.s32.totalorder %s28, 2
    %s30 = scalar_select %p29, 0, %s28
    %s31 = ssub.s32 %s18, %s30
    %s32 = ssub.s32 %s19, %s26
    %s33 = sor.u32 %s31, %s32
    %p34 = scmp.eq.s32.totalorder %s33, 0
    %s36 = sadd.s32 %s35, 1
    %s37 = scalar_select %p34, %s35, %s36
    %p40 = pneg %p34
    %p41 = scmp.eq.s32.totalorder %s11, 5
    %p42 = por %p40, %p41
    %p43 = scmp.ne.s32.totalorder %s35, %s38
    %p44 = scmp.eq.s32.totalorder %s11, 0
    %p45 = por %p43, %p44
    %p46 = scmp.ne.s32.totalorder %s35, %s38
    %p47 = scmp.eq.s32.totalorder %s16, 5
    %p48 = por %p46, %p47
    %p49 = scmp.ne.s32.totalorder %s38, %s39
    %p50 = scmp.eq.s32.totalorder %s16, 0
    %p51 = por %p49, %p50
    %p52 = scmp.ne.s32.totalorder %s38, %s39
    %p53 = scmp.eq.s32.totalorder %s17, 5
    %p54 = por %p52, %p53
    %p56 = scmp.ne.s32.totalorder %s39, %s55
    %p57 = scmp.eq.s32.totalorder %s17, 0
    %p58 = por %p56, %p57
    %s59 = ssub.s32 %s19, %s26
    %p60 = scmp.eq.s32.totalorder %s59, 0
    %s62 = sadd.s32 %s61, 1
    %s63 = scalar_select %p60, %s61, %s62
    %p66 = pneg %p60
    %p67 = scmp.eq.s32.totalorder %s11, 5
    %p68 = por %p66, %p67
    %p69 = scmp.ne.s32.totalorder %s61, %s64
    %p70 = scmp.eq.s32.totalorder %s11, 0
    %p71 = por %p69, %p70
    %p72 = scmp.ne.s32.totalorder %s61, %s64
    %p73 = scmp.eq.s32.totalorder %s16, 5
    %p74 = por %p72, %p73
    %p75 = scmp.ne.s32.totalorder %s64, %s65
    %p76 = scmp.eq.s32.totalorder %s16, 0
    %p77 = por %p75, %p76
    %p78 = scmp.ne.s32.totalorder %s64, %s65
    %p79 = scmp.eq.s32.totalorder %s17, 5
    %p80 = por %p78, %p79
    %p82 = scmp.ne.s32.totalorder %s65, %s81
    %p83 = scmp.eq.s32.totalorder %s17, 0
    %p84 = por %p82, %p83
    %s85 = ssub.s32 %s19, %s26
    %p86 = scmp.eq.s32.totalorder %s85, 0
    %s88 = sadd.s32 %s87, 1
    %s89 = scalar_select %p86, %s87, %s88
    %p92 = pneg %p86
    %p93 = scmp.eq.s32.totalorder %s11, 5
    %p94 = por %p92, %p93
    %p95 = scmp.ne.s32.totalorder %s87, %s90
    %p96 = scmp.eq.s32.totalorder %s11, 0
    %p97 = por %p95, %p96
    %p98 = scmp.ne.s32.totalorder %s87, %s90
    %p99 = scmp.eq.s32.totalorder %s16, 5
    %p100 = por %p98, %p99
    %p101 = scmp.ne.s32.totalorder %s90, %s91
    %p102 = scmp.eq.s32.totalorder %s16, 0
    %p103 = por %p101, %p102
    %p104 = scmp.ne.s32.totalorder %s90, %s91
    %p105 = scmp.eq.s32.totalorder %s17, 5
    %p106 = por %p104, %p105
    %p108 = scmp.ne.s32.totalorder %s91, %s107
    %p109 = scmp.eq.s32.totalorder %s17, 0
    %p110 = por %p108, %p109
    %s111 = ssub.s32 %s18, %s30
    %p112 = scmp.eq.s32.totalorder %s111, 0
    %s114 = sadd.s32 %s113, 1
    %s115 = scalar_select %p112, %s113, %s114
    %p118 = pneg %p112
    %p119 = scmp.eq.s32.totalorder %s11, 5
    %p120 = por %p118, %p119
    %p121 = scmp.ne.s32.totalorder %s113, %s116
    %p122 = scmp.eq.s32.totalorder %s11, 0
    %p123 = por %p121, %p122
    %p124 = scmp.ne.s32.totalorder %s113, %s116
    %p125 = scmp.eq.s32.totalorder %s16, 5
    %p126 = por %p124, %p125
    %p127 = scmp.ne.s32.totalorder %s116, %s117
    %p128 = scmp.eq.s32.totalorder %s16, 0
    %p129 = por %p127, %p128
    %p130 = scmp.ne.s32.totalorder %s116, %s117
    %p131 = scmp.eq.s32.totalorder %s17, 5
    %p132 = por %p130, %p131
    %p134 = scmp.ne.s32.totalorder %s117, %s133
    %p135 = scmp.eq.s32.totalorder %s17, 0
    %p136 = por %p134, %p135
    %s137 = ssub.s32 %s18, %s30
    %p138 = scmp.eq.s32.totalorder %s137, 0
    %s140 = sadd.s32 %s139, 1
    %s141 = scalar_select %p138, %s139, %s140
    %p144 = pneg %p138
    %p145 = scmp.eq.s32.totalorder %s11, 5
    %p146 = por %p144, %p145
    %p147 = scmp.ne.s32.totalorder %s139, %s142
    %p148 = scmp.eq.s32.totalorder %s11, 0
    %p149 = por %p147, %p148
    %p150 = scmp.ne.s32.totalorder %s139, %s142
    %p151 = scmp.eq.s32.totalorder %s16, 5
    %p152 = por %p150, %p151
    %p153 = scmp.ne.s32.totalorder %s142, %s143
    %p154 = scmp.eq.s32.totalorder %s16, 0
    %p155 = por %p153, %p154
    %p156 = scmp.ne.s32.totalorder %s142, %s143
    %p157 = scmp.eq.s32.totalorder %s17, 5
    %p158 = por %p156, %p157
    %p160 = scmp.ne.s32.totalorder %s143, %s159
    %p161 = scmp.eq.s32.totalorder %s17, 0
    %p162 = por %p160, %p161
    %p163 = scmp.le.s32.totalorder 1, %s11
    %p164 = scmp.lt.s32.totalorder %s11, 7
    %p165 = pnand %p163, %p164
    %p166 = pneg %p165
    // Predicated region
    $region9: #{encode_nonz_forward.1} parent=5 // pred_check
      _
    $region10: #{encode_nonz_forward.1} parent=5 // pred_check_branch
      %168 = sbr.rel (%p165) target = $region12
    $region11: #{encode_nonz_forward.1} parent=5 // pred_region
      %s169 = ssub.s32 %s11, 1
    $region12: #{encode_nonz_forward.1} parent=5 // pred_fallthru
      _
    %p170 = scmp.lt.s32.totalorder %s11, 6
    // Predicated region
    $region13: #{encode_nonz_forward.1} parent=5 // pred_check
      %p171 = pneg %p170
    $region14: #{encode_nonz_forward.1} parent=5 // pred_check_branch
      %173 = sbr.rel (%p171) target = $region16
    $region15: #{encode_nonz_forward.1} parent=5 // pred_region
      // Predicated region
      $region17: #{encode_nonz_forward.1} parent=15 // pred_check
        %p174 = pneg %p45
      $region18: #{encode_nonz_forward.1} parent=15 // pred_check_branch
        %176 = sbr.rel (%p174) target = $region20
      $region19: #{encode_nonz_forward.1} parent=15 // pred_region
        %p177 = scmp.lt.s32.totalorder %s18, 1
        %s178 = scalar_select %p177, %s18, 1
        %p179 = scmp.lt.s32.totalorder %s19, 2
        %s180 = scalar_select %p179, %s19, 2
        %s181 = smul.addr %s178, 3
        %s182 = sadd.s32 %s180, %s181
        %s183 = smul.addr %s182, 8
        %s184 = scalar_lea.vmem %s0, %s183
      $region20: #{encode_nonz_forward.1} parent=15 // pred_fallthru
        _
      // Predicated region
      $region21: #{encode_nonz_forward.1} parent=15 // pred_check
        %p185 = pneg %p71
      $region22: #{encode_nonz_forward.1} parent=15 // pred_check_branch
        %187 = sbr.rel (%p185) target = $region24
      $region23: #{encode_nonz_forward.1} parent=15 // pred_region
        %p188 = scmp.lt.s32.totalorder %s19, 2
        %s189 = scalar_select %p188, %s19, 2
        %s190 = scalar_lea.vmem %s1, %s189
      $region24: #{encode_nonz_forward.1} parent=15 // pred_fallthru
        _
      // Predicated region
      $region25: #{encode_nonz_forward.1} parent=15 // pred_check
        %p191 = pneg %p97
      $region26: #{encode_nonz_forward.1} parent=15 // pred_check_branch
        %193 = sbr.rel (%p191) target = $region28
      $region27: #{encode_nonz_forward.1} parent=15 // pred_region
        %s194 = smul.u32 16, %s19
        %p195 = scmp.lt.s32.totalorder %s194, 47
        %s196 = scalar_select %p195, %s194, 47
        %s197 = smul.addr %s196, 4
        %s198 = scalar_lea.vmem %s2, %s197
        %s199 = smul.u32 16, %s19
      $region28: #{encode_nonz_forward.1} parent=15 // pred_fallthru
        _
    $region16: #{encode_nonz_forward.1} parent=5 // pred_fallthru
      _
    %p200 = scmp.le.s32.totalorder 1, %s11
    %p201 = scmp.lt.s32.totalorder %s11, 7
    %p202 = pnand %p200, %p201
    %p203 = pneg %p202
    // Predicated region
    $region29: #{encode_nonz_forward.1} parent=5 // pred_check
      _
    $region30: #{encode_nonz_forward.1} parent=5 // pred_check_branch
      %205 = sbr.rel (%p202) target = $region32
    $region31: #{encode_nonz_forward.1} parent=5 // pred_region
      %s206 = ssub.s32 %s11, 1
      %p207 = scmp.lt.s32.totalorder %s20, 1
      %s208 = scalar_select %p207, %s20, 1
      %p209 = scmp.lt.s32.totalorder %s21, 2
      %s210 = scalar_select %p209, %s21, 2
      %s211 = smul.addr %s208, 3
      %s212 = sadd.s32 %s210, %s211
      %s213 = smul.addr %s212, 8
      %s214 = scalar_lea.vmem %s0, %s213
      %p215 = pneg %p51
      %p216 = pneg %p48
      %p217 = scmp.lt.s32.totalorder %s21, 2
      %s218 = scalar_select %p217, %s21, 2
      %s219 = scalar_lea.vmem %s1, %s218
      %p220 = pneg %p77
      %p221 = pneg %p74
      %s222 = smul.u32 16, %s21
      %p223 = scmp.lt.s32.totalorder %s222, 47
      %s224 = scalar_select %p223, %s222, 47
      %s225 = smul.addr %s224, 4
      %s226 = scalar_lea.vmem %s2, %s225
      %p227 = pneg %p103
      %p228 = pneg %p100
      %p229 = pneg %p129
      %p230 = pneg %p126
      %p231 = scmp.lt.s32.totalorder %s20, 1
      %s232 = scalar_select %p231, %s20, 1
      %s233 = smul.addr %s232, 8
      %s234 = scalar_lea.vmem %s3, %s233
      %p235 = pneg %p155
      %p236 = pneg %p152
      %p237 = scmp.lt.s32.totalorder %s20, 1
      %s238 = scalar_select %p237, %s20, 1
      %s239 = smul.addr %s238, 8
      %s240 = scalar_lea.vmem %s4, %s239
      %p241 = scmp.lt.s32.totalorder %s20, 1
      %s242 = scalar_select %p241, %s20, 1
      %p243 = scmp.lt.s32.totalorder %s21, 2
      %s244 = scalar_select %p243, %s21, 2
      %s245 = smul.addr %s242, 3
      %s246 = sadd.s32 %s244, %s245
      %s247 = smul.addr %s246, 8
      %s248 = scalar_lea.vmem %s0, %s247
      %p249 = scmp.lt.s32.totalorder %s21, 2
      %s250 = scalar_select %p249, %s21, 2
      %s251 = scalar_lea.vmem %s1, %s250
      %s252 = smul.u32 16, %s21
      %p253 = scmp.lt.s32.totalorder %s252, 47
      %s254 = scalar_select %p253, %s252, 47
      %s255 = smul.addr %s254, 4
      %s256 = scalar_lea.vmem %s2, %s255
      %s257 = smul.u32 16, %s21
      %p258 = scmp.lt.s32.totalorder %s20, 1
      %s259 = scalar_select %p258, %s20, 1
      %s260 = smul.addr %s259, 8
      %s261 = scalar_lea.vmem %s3, %s260
      %p262 = scmp.lt.s32.totalorder %s20, 1
      %s263 = scalar_select %p262, %s20, 1
      %s264 = smul.addr %s263, 8
      %s265 = scalar_lea.vmem %s4, %s264
      %p267 = scmp.eq.s32.totalorder %s21, 0
      // Predicated region
      $region33: #{encode_nonz_forward.1} parent=31 // pred_check
        %p268 = pneg %p267
      $region34: #{encode_nonz_forward.1} parent=31 // pred_check_branch
        %270 = sbr.rel (%p268) target = $region36
      $region35: #{encode_nonz_forward.1} parent=31 // pred_region
        %vm271 = vcmask 64512
        %272 = vst.msk [vmem:[%s261] sm:$0xff] %vm271, 0.0
        %273 = vst [vmem:[%s265] sm:$0xff] 0.0
      $region36: #{encode_nonz_forward.1} parent=31 // pred_fallthru
        _
      %v274 = vld [vmem:[%s248] sm:$0xff]
      %v275 = vld [vmem:[%s251] sm:$0x1]
      %v276 = vadd.f32 %v274, 1.0
      %v277 = vlog2.pop %v276
      %v278 = vmul.f32 %v277, 0.6931472
      %279 = vadd.xlane.f32.xlu0 %v274
      %v280 = vpop.xlane.xlu0 %279
      %vm281 = vcmp.gt.f32.partialorder %v274, 0.0
      %v282 = vsel %vm281, 1.0, 0.0
      %283 = vadd.xlane.f32.xlu0 %v282
      %v284 = vpop.xlane.xlu0 %283
      %v286 = vlaneseq
      %v287 = vshrl.u32 %v286, 7
      %v288 = vsub.s32 0, %v287
      %v289 = vrot.slane %v275, %v288
      %v291 = vmul.f32 %v274, %v289
      %292 = vadd.xlane.f32.xlu0 %v291
      %v293 = vpop.xlane.xlu0 %292
      %v294 = vadd.f32 %v276, 1.0
      %v295 = vmul.f32 %v276, %v294
      %v296 = vadd.f32 %v276, 2.0
      %v297 = vmul.f32 %v295, %v296
      %v298 = vadd.f32 %v276, 3.0
      %v299 = vmul.f32 %v297, %v298
      %v300 = vadd.f32 %v276, 4.0
      %v301 = vrcp.pop %v300
      %v302 = vmul.f32 %v301, %v301
      %v303 = vmul.f32 %v301, 0.083333336
      %v304 = vmul.f32 %v301, %v302
      %v305 = vmul.f32 %v304, 0.0027777778
      %v306 = vsub.f32 %v303, %v305
      %v307 = vsub.f32 %v300, 0.5
      %v308 = vlog2.pop %v300
      %v309 = vmul.f32 %v308, 0.6931472
      %v310 = vmul.f32 %v307, %v309
      %v311 = vsub.f32 %v310, %v300
      %v312 = vadd.f32 %v311, 0.9189385
      %v313 = vadd.f32 %v312, %v306
      %v314 = vlog2.pop %v299
      %v315 = vmul.f32 %v314, 0.6931472
      %v316 = vsub.f32 %v313, %v315
      %317 = vadd.xlane.f32.xlu0 %v316
      %v318 = vpop.xlane.xlu0 %317
      %319 = vadd.xlane.f32.xlu0 %v278
      %v320 = vpop.xlane.xlu0 %319
      %v321 = vmul.f32 %v278, %v278
      %322 = vadd.xlane.f32.xlu0 %v321
      %v323 = vpop.xlane.xlu0 %322
      %v324 = vld [vmem:[%s265] sm:$0xff]
      %v325 = vpack.c.bf16 %v278, %v278
      %v326 = vld [vmem:[%s256] sm:$0xf]
      %v327 = vld [vmem:[%s256 + $0x4] sm:$0xf]
      %v328 = vld [vmem:[%s256 + $0x8] sm:$0xf]
      %v329 = vld [vmem:[%s256 + $0xc] sm:$0xf]
      %v330 = vld [vmem:[%s256 + $0x10] sm:$0xf]
      %v331 = vld [vmem:[%s256 + $0x14] sm:$0xf]
      %v332 = vld [vmem:[%s256 + $0x18] sm:$0xf]
      %v333 = vld [vmem:[%s256 + $0x1c] sm:$0xf]
      %v334 = vld [vmem:[%s256 + $0x20] sm:$0xf]
      %v335 = vld [vmem:[%s256 + $0x24] sm:$0xf]
      %v336 = vld [vmem:[%s256 + $0x28] sm:$0xf]
      %v337 = vld [vmem:[%s256 + $0x2c] sm:$0xf]
      %v338 = vld [vmem:[%s256 + $0x30] sm:$0xf]
      %v339 = vld [vmem:[%s256 + $0x34] sm:$0xf]
      %v340 = vld [vmem:[%s256 + $0x38] sm:$0xf]
      %v341 = vld [vmem:[%s256 + $0x3c] sm:$0xf]
      %v358 = vunpack.c.l.b16 %v326
      %v359 = vunpack.c.l.b16 %v327
      %v360 = vunpack.c.l.b16 %v328
      %v361 = vunpack.c.l.b16 %v329
      %v362 = vunpack.c.l.b16 %v330
      %v363 = vunpack.c.l.b16 %v331
      %v364 = vunpack.c.l.b16 %v332
      %v365 = vunpack.c.l.b16 %v333
      %v366 = vunpack.c.l.b16 %v334
      %v367 = vunpack.c.l.b16 %v335
      %v368 = vunpack.c.l.b16 %v336
      %v369 = vunpack.c.l.b16 %v337
      %v370 = vunpack.c.l.b16 %v338
      %v371 = vunpack.c.l.b16 %v339
      %v372 = vunpack.c.l.b16 %v340
      %v373 = vunpack.c.l.b16 %v341
      %v374 = vpack.c.b16 %v359, %v358
      %v375 = vpack.c.b16 %v361, %v360
      %v376 = vpack.c.b16 %v363, %v362
      %v377 = vpack.c.b16 %v365, %v364
      %v378 = vpack.c.b16 %v367, %v366
      %v379 = vpack.c.b16 %v369, %v368
      %v380 = vpack.c.b16 %v371, %v370
      %v381 = vpack.c.b16 %v373, %v372
      %390 = vmatprep.subr.bf16.mxu0 0
      %391 = vmatpush1.bf16.msra.mxu0 %v374
      %392 = vmatprep.subr.bf16.mxu0 0
      %393 = vmatpush1.bf16.msra.mxu0 %v375
      %394 = vmatprep.subr.bf16.mxu0 0
      %395 = vmatpush1.bf16.msra.mxu0 %v376
      %396 = vmatprep.subr.bf16.mxu0 0
      %397 = vmatpush1.bf16.msra.mxu0 %v377
      %398 = vmatprep.subr.bf16.mxu0 0
      %399 = vmatpush1.bf16.msra.mxu0 %v378
      %400 = vmatprep.subr.bf16.mxu0 0
      %401 = vmatpush1.bf16.msra.mxu0 %v379
      %402 = vmatprep.subr.bf16.mxu0 0
      %403 = vmatpush1.bf16.msra.mxu0 %v380
      %404 = vmatprep.subr.bf16.mxu0 0
      %405 = vmatpush1.bf16.msra.mxu0 %v381
      %406 = vmatprep.subr.bf16.mxu0 0
      %407 = vmatpush1.bf16.msra.mxu0 0
      %408 = vmatprep.subr.bf16.mxu0 0
      %409 = vmatpush1.bf16.msra.mxu0 0
      %410 = vmatprep.subr.bf16.mxu0 0
      %411 = vmatpush1.bf16.msra.mxu0 0
      %412 = vmatprep.subr.bf16.mxu0 0
      %413 = vmatpush1.bf16.msra.mxu0 0
      %414 = vmatprep.subr.bf16.mxu0 0
      %415 = vmatpush1.bf16.msra.mxu0 0
      %416 = vmatprep.subr.bf16.mxu0 0
      %417 = vmatpush1.bf16.msra.mxu0 0
      %418 = vmatprep.subr.bf16.mxu0 0
      %419 = vmatpush1.bf16.msra.mxu0 0
      %420 = vmatprep.subr.bf16.mxu0 0
      %421 = vmatpush1.bf16.msra.mxu0 0
      %422 = vmatprep.mubr.bf16.mxu0 0
      %423 = vmatmul.mubr.bf16.gmra.mrb[0].mxu0 %v325
      %v424 = vpop.f32.mrb[0].mxu0
      %v425 = vadd.f32 0.0, %v424
      %v426 = vpop.f32.mrb[0].mxu0
      %v427 = vpop.f32.mrb[0].mxu0
      %v428 = vpop.f32.mrb[0].mxu0
      %429 = vdwg.mxu0
      %v430 = vadd.f32 %v324, %v425
      %431 = vst [vmem:[%s265] sm:$0xff] %v430
      %v432 = vlaneseq
      %v433 = vand.u32 %v432, 127
      %vm434 = vcmp.eq.s32.totalorder %v433, 0
      %v435 = vsel %vm434, %v280, 0.0
      %vm436 = vcmp.eq.s32.totalorder %v433, 1
      %v437 = vsel %vm436, %v284, 0.0
      %v438 = vadd.f32 %v435, %v437
      %vm439 = vcmp.eq.s32.totalorder %v433, 2
      %v440 = vsel %vm439, %v293, 0.0
      %v441 = vadd.f32 %v438, %v440
      %vm442 = vcmp.eq.s32.totalorder %v433, 3
      %v443 = vsel %vm442, %v318, 0.0
      %v444 = vadd.f32 %v441, %v443
      %vm445 = vcmp.eq.s32.totalorder %v433, 4
      %v446 = vsel %vm445, %v320, 0.0
      %v447 = vadd.f32 %v444, %v446
      %vm448 = vcmp.eq.s32.totalorder %v433, 5
      %v449 = vsel %vm448, %v323, 0.0
      %v450 = vadd.f32 %v447, %v449
      %v451 = vld [vmem:[%s261] sm:$0xff]
      %v452 = vadd.f32 %v451, %v450
      %vm453 = vcmask 64512
      %454 = vst.msk [vmem:[%s261] sm:$0xff] %vm453, %v452
      %p455 = scmp.lt.s32.totalorder %s20, 1
      %s456 = scalar_select %p455, %s20, 1
      %s457 = smul.addr %s456, 8
      %s458 = scalar_lea.vmem %s3, %s457
      %p459 = scmp.lt.s32.totalorder %s20, 1
      %s460 = scalar_select %p459, %s20, 1
      %s461 = smul.addr %s460, 8
      %s462 = scalar_lea.vmem %s4, %s461
      // Predicated region
      $region37: #{encode_nonz_forward.1} parent=31 // pred_check
        %p463 = pneg %p126
      $region38: #{encode_nonz_forward.1} parent=31 // pred_check_branch
        %465 = sbr.rel (%p463) target = $region40
      $region39: #{encode_nonz_forward.1} parent=31 // pred_region
        _
      $region40: #{encode_nonz_forward.1} parent=31 // pred_fallthru
        _
      // Predicated region
      $region41: #{encode_nonz_forward.1} parent=31 // pred_check
        %p466 = pneg %p152
      $region42: #{encode_nonz_forward.1} parent=31 // pred_check_branch
        %468 = sbr.rel (%p466) target = $region44
      $region43: #{encode_nonz_forward.1} parent=31 // pred_region
        _
      $region44: #{encode_nonz_forward.1} parent=31 // pred_fallthru
        _
    $region32: #{encode_nonz_forward.1} parent=5 // pred_fallthru
      _
    %p469 = scmp.le.s32.totalorder 2, %s11
    // Predicated region
    $region45: #{encode_nonz_forward.1} parent=5 // pred_check
      %p470 = pneg %p469
    $region46: #{encode_nonz_forward.1} parent=5 // pred_check_branch
      %472 = sbr.rel (%p470) target = $region48
    $region47: #{encode_nonz_forward.1} parent=5 // pred_region
      %s473 = ssub.s32 %s11, 2
      // Predicated region
      $region49: #{encode_nonz_forward.1} parent=47 // pred_check
        %p474 = pneg %p132
      $region50: #{encode_nonz_forward.1} parent=47 // pred_check_branch
        %476 = sbr.rel (%p474) target = $region52
      $region51: #{encode_nonz_forward.1} parent=47 // pred_region
        %p477 = scmp.lt.s32.totalorder %s22, 1
        %s478 = scalar_select %p477, %s22, 1
        %s479 = smul.addr %s478, 8
        %s480 = scalar_lea.vmem %s3, %s479
      $region52: #{encode_nonz_forward.1} parent=47 // pred_fallthru
        _
      // Predicated region
      $region53: #{encode_nonz_forward.1} parent=47 // pred_check
        %p481 = pneg %p158
      $region54: #{encode_nonz_forward.1} parent=47 // pred_check_branch
        %483 = sbr.rel (%p481) target = $region56
      $region55: #{encode_nonz_forward.1} parent=47 // pred_region
        %p484 = scmp.lt.s32.totalorder %s22, 1
        %s485 = scalar_select %p484, %s22, 1
        %s486 = smul.addr %s485, 8
        %s487 = scalar_lea.vmem %s4, %s486
      $region56: #{encode_nonz_forward.1} parent=47 // pred_fallthru
        _
    $region48: #{encode_nonz_forward.1} parent=5 // pred_fallthru
      _
  $region6: #{encode_nonz_forward.1} parent=0 // loop_footer
    %s15 = sadd.s32 1, %s11
  $region7: #{encode_nonz_forward.1} parent=0 // loop_footer_branch
    %10 = sbr.rel target = $region3
  $region8: #{encode_nonz_forward.1} parent=0 // loop_exit
    _

</llo_original>
